<compile_context>
chip_gen: v5e
topology: v5e:2x2
jax: 0.10.0
libtpu: 0.0.40
codegen_flags: <defaults>
</compile_context>

<pallas_src>
import jax
import jax.numpy as jnp
from jax.experimental import pallas as pl
from jax.experimental.pallas import tpu as pltpu


def _round_up(x, m):
    return ((x + m - 1) // m) * m


# ----------------------------------------------------------------------------
# Fused kernel: one batch-tile per grid step.
#   src_ref: (TB, S, K1)  f32 activations         (K1 = 2*hid_dim)
#   w1_ref : (K1, Hp)     bf16                     (Hp = hid_dim padded to 128)
#   b1_ref : (1, Hp)      f32
#   w2_ref : (S, Hp, Op)  bf16                     (Op = out_dim padded to 128)
#   b2_ref : (1, Op)      f32
#   o_ref  : (TB, Op)     f32
# ----------------------------------------------------------------------------
def _fused_decoder_kernel(src_ref, w1_ref, b1_ref, w2_ref, b2_ref, o_ref):
    TB, S, K1 = src_ref.shape
    Hp = w1_ref.shape[1]
    Op = o_ref.shape[1]

    # ---- FC1: (TB*S, K1) @ (K1, Hp), bf16 inputs, f32 accumulation ----
    x = src_ref[...].reshape(TB * S, K1).astype(jnp.bfloat16)
    h = jnp.dot(x, w1_ref[...], preferred_element_type=jnp.float32)
    h = h + b1_ref[...]                                   # bias (f32 VPU add)

    # ---- FC2: h.view(B, S*H) @ W2  ==  sum_s h[:, s, :] @ W2[s] ----
    # Intermediate never leaves VMEM; reduction over the (small, static) seq
    # axis is unrolled so each step is a lane-dense 128-deep MXU matmul.
    h3 = h.reshape(TB, S, Hp).astype(jnp.bfloat16)
    acc = jnp.zeros((TB, Op), jnp.float32)
    for s in range(S):
        acc = acc + jnp.dot(h3[:, s, :], w2_ref[s],
                            preferred_element_type=jnp.float32)

    o_ref[...] = (acc + b2_ref[...]).astype(o_ref.dtype)


# ----------------------------------------------------------------------------
# One-time parameter preparation: pad lane dims to 128, cast weights to bf16.
# (Off the hot path; padding is a no-op for dims already multiples of 128.)
# ----------------------------------------------------------------------------
def prepare_params(params, seq_len):
    w1, b1, w2, b2 = params["w1"], params["b1"], params["w2"], params["b2"]
    K1, H = w1.shape                 # (2*hid, hid)
    SH, O = w2.shape                 # (hid*seq_len, out_dim)
    assert SH == seq_len * H
    Hp = _round_up(H, 128)
    Op = _round_up(O, 128)

    w1p = jnp.pad(w1, ((0, 0), (0, Hp - H))).astype(jnp.bfloat16)
    b1p = jnp.pad(b1, (0, Hp - H)).reshape(1, Hp).astype(jnp.float32)
    # w2 rows are ordered (s, h) because of torch's row-major .view(B, S*H).
    w2p = jnp.pad(w2.reshape(seq_len, H, O),
                  ((0, 0), (0, Hp - H), (0, Op - O))).astype(jnp.bfloat16)
    b2p = jnp.pad(b2, (0, Op - O)).reshape(1, Op).astype(jnp.float32)

    return {"w1": w1p, "b1": b1p, "w2": w2p, "b2": b2p,
            "hid_dim": H, "out_dim": O, "seq_len": seq_len}


# ----------------------------------------------------------------------------
# Forward wrapper.
# ----------------------------------------------------------------------------
def sees_decoder_with_att_inputs(src, prep):
    B, S, K1 = src.shape
    assert S == prep["seq_len"]
    w1, b1, w2, b2 = prep["w1"], prep["b1"], prep["w2"], prep["b2"]
    O = prep["out_dim"]
    Hp = w1.shape[1]
    Op = b2.shape[1]

    # Batch tiling: TB is always a multiple of 8 (sublane-legal output block),
    # capped at 128 rows per step; pad B up to a multiple of TB.
    TB = min(_round_up(B, 8), 128)
    B_pad = _round_up(B, TB)
    src_p = jnp.pad(src, ((0, B_pad - B), (0, 0), (0, 0)))

    grid = (B_pad // TB,)

    flops = 2 * B_pad * S * (K1 * Hp + Hp * Op)
    bytes_accessed = (B_pad * S * K1 * 4          # src
                      + K1 * Hp * 2               # w1 (bf16)
                      + S * Hp * Op * 2           # w2 (bf16)
                      + Hp * 4 + Op * 4           # biases
                      + B_pad * Op * 4)           # output

    out_p = pl.pallas_call(
        _fused_decoder_kernel,
        out_shape=jax.ShapeDtypeStruct((B_pad, Op), jnp.float32),
        grid_spec=pltpu.PrefetchScalarGridSpec(
            num_scalar_prefetch=0,
            grid=grid,
            in_specs=[
                pl.BlockSpec((TB, S, K1), lambda i: (i, 0, 0)),   # src tile
                pl.BlockSpec((K1, Hp), lambda i: (0, 0)),         # w1
                pl.BlockSpec((1, Hp), lambda i: (0, 0)),          # b1
                pl.BlockSpec((S, Hp, Op), lambda i: (0, 0, 0)),   # w2
                pl.BlockSpec((1, Op), lambda i: (0, 0)),          # b2
            ],
            out_specs=pl.BlockSpec((TB, Op), lambda i: (i, 0)),
        ),
        compiler_params=pltpu.CompilerParams(
            dimension_semantics=("parallel",),       # shard batch tiles (v7x 2 TCs)
            vmem_limit_bytes=32 * 1024 * 1024,
        ),
        cost_estimate=pl.CostEstimate(
            flops=flops, transcendentals=0, bytes_accessed=bytes_accessed),
    )(src_p, w1, b1, w2, b2)

    return out_p[:B, :O]


# ----------------------------------------------------------------------------
# Deterministic init mimicking nn.Linear default (U[-1/sqrt(fan_in), +]).
# Weights stored transposed vs. torch, i.e. (in, out), so forward does x @ w.
# ----------------------------------------------------------------------------
def init_params(key, hid_dim, out_dim, seq_len, dtype=jnp.float32):
    k1, k2, k3, k4 = jax.random.split(key, 4)
    fan1 = hid_dim * 2
    fan2 = hid_dim * seq_len
    bound1 = 1.0 / jnp.sqrt(fan1)
    bound2 = 1.0 / jnp.sqrt(fan2)
    w1 = jax.random.uniform(k1, (fan1, hid_dim), dtype, -bound1, bound1)
    b1 = jax.random.uniform(k2, (hid_dim,), dtype, -bound1, bound1)
    w2 = jax.random.uniform(k3, (fan2, out_dim), dtype, -bound2, bound2)
    b2 = jax.random.uniform(k4, (out_dim,), dtype, -bound2, bound2)
    return {"w1": w1, "b1": b1, "w2": w2, "b2": b2}


if __name__ == "__main__":
    batch, seq_len, hid_dim, out_dim = 2, 8, 32, 16

    key = jax.random.PRNGKey(0)
    k_src, k_par = jax.random.split(key)
    src = jax.random.normal(k_src, (batch, seq_len, hid_dim * 2), jnp.float32)
    params = init_params(k_par, hid_dim, out_dim, seq_len)
    prep = prepare_params(params, seq_len)

    out = sees_decoder_with_att_inputs(src, prep)
    out = jax.block_until_ready(out)

    # Reference (full f32) of the same math as the PyTorch forward.
    ref_h = src.reshape(batch * seq_len, -1) @ params["w1"] + params["b1"]
    ref = ref_h.reshape(batch, seq_len * hid_dim) @ params["w2"] + params["b2"]

    assert out.shape == (batch, out_dim)
    # bf16 matmul inputs with f32 accumulation: loosen tolerance accordingly.
    assert jnp.allclose(out, ref, atol=2e-2, rtol=2e-2), \
        float(jnp.max(jnp.abs(out - ref)))

    print("KERNEL_OK")
</pallas_src>

<mosaic_0001>
module attributes {stable_mosaic.version = 11 : i64} {
  func.func @_fused_decoder_kernel(%arg0: i32, %arg1: memref<8x8x64xf32, #tpu.memory_space<vmem>>, %arg2: memref<64x128xbf16, #tpu.memory_space<vmem>>, %arg3: memref<1x128xf32, #tpu.memory_space<vmem>>, %arg4: memref<8x128x128xbf16, #tpu.memory_space<vmem>>, %arg5: memref<1x128xf32, #tpu.memory_space<vmem>>, %arg6: memref<8x128xf32, #tpu.memory_space<vmem>>) attributes {dimension_semantics = [#tpu.dimension_semantics<parallel>], iteration_bounds = array<i64: 1>, scalar_prefetch = 0 : i64, scratch_operands = 0 : i64, tpu.core_type = #tpu.core_type<tc>, window_params = [{transform_indices = @transform_0, window_bounds = array<i64: 8, 8, 64>}, {pipeline_mode = #tpu.pipeline_mode<synchronous>, transform_indices = @transform_1, window_bounds = array<i64: 64, 128>}, {pipeline_mode = #tpu.pipeline_mode<synchronous>, transform_indices = @transform_2, window_bounds = array<i64: 1, 128>}, {pipeline_mode = #tpu.pipeline_mode<synchronous>, transform_indices = @transform_3, window_bounds = array<i64: 8, 128, 128>}, {pipeline_mode = #tpu.pipeline_mode<synchronous>, transform_indices = @transform_4, window_bounds = array<i64: 1, 128>}, {transform_indices = @transform_5, window_bounds = array<i64: 8, 128>}]} {
    %c0 = arith.constant 0 : index
    %c0_0 = arith.constant 0 : index
    %c0_1 = arith.constant 0 : index
    %0 = vector.load %arg1[%c0, %c0_0, %c0_1] : memref<8x8x64xf32, #tpu.memory_space<vmem>>, vector<8x8x64xf32>
    %1 = vector.shape_cast %0 : vector<8x8x64xf32> to vector<64x64xf32>
    %2 = arith.truncf %1 : vector<64x64xf32> to vector<64x64xbf16>
    %c0_2 = arith.constant 0 : index
    %c0_3 = arith.constant 0 : index
    %3 = vector.load %arg2[%c0_2, %c0_3] : memref<64x128xbf16, #tpu.memory_space<vmem>>, vector<64x128xbf16>
    %cst = arith.constant dense<0.000000e+00> : vector<64x128xf32>
    %4 = tpu.matmul %2, %3, %cst {dimension_numbers = #tpu.dot_dimension_numbers<[1], [0], [0], [1], [0, 0, 1, 1], [], []>} : vector<64x64xbf16>, vector<64x128xbf16>, vector<64x128xf32> -> vector<64x128xf32>
    %c0_4 = arith.constant 0 : index
    %c0_5 = arith.constant 0 : index
    %5 = vector.load %arg3[%c0_4, %c0_5] : memref<1x128xf32, #tpu.memory_space<vmem>>, vector<1x128xf32>
    %6 = vector.broadcast %5 : vector<1x128xf32> to vector<64x128xf32>
    %7 = arith.addf %4, %6 : vector<64x128xf32>
    %8 = vector.shape_cast %7 : vector<64x128xf32> to vector<8x8x128xf32>
    %9 = arith.truncf %8 : vector<8x8x128xf32> to vector<8x8x128xbf16>
    %cst_6 = arith.constant 0.000000e+00 : f32
    %10 = vector.broadcast %cst_6 : f32 to vector<8x128xf32>
    %11 = vector.extract_strided_slice %9 {offsets = [0, 0, 0], sizes = [8, 1, 128], strides = [1, 1, 1]} : vector<8x8x128xbf16> to vector<8x1x128xbf16>
    %12 = vector.shape_cast %11 : vector<8x1x128xbf16> to vector<8x128xbf16>
    %c0_7 = arith.constant 0 : index
    %c0_8 = arith.constant 0 : index
    %c0_9 = arith.constant 0 : index
    %13 = vector.load %arg4[%c0_7, %c0_8, %c0_9] : memref<8x128x128xbf16, #tpu.memory_space<vmem>>, vector<1x128x128xbf16>
    %14 = vector.shape_cast %13 : vector<1x128x128xbf16> to vector<128x128xbf16>
    %cst_10 = arith.constant dense<0.000000e+00> : vector<8x128xf32>
    %15 = tpu.matmul %12, %14, %cst_10 {dimension_numbers = #tpu.dot_dimension_numbers<[1], [0], [0], [1], [0, 0, 1, 1], [], []>} : vector<8x128xbf16>, vector<128x128xbf16>, vector<8x128xf32> -> vector<8x128xf32>
    %16 = arith.addf %10, %15 : vector<8x128xf32>
    %17 = vector.extract_strided_slice %9 {offsets = [0, 1, 0], sizes = [8, 1, 128], strides = [1, 1, 1]} : vector<8x8x128xbf16> to vector<8x1x128xbf16>
    %18 = vector.shape_cast %17 : vector<8x1x128xbf16> to vector<8x128xbf16>
    %c1 = arith.constant 1 : index
    %c0_11 = arith.constant 0 : index
    %c0_12 = arith.constant 0 : index
    %19 = vector.load %arg4[%c1, %c0_11, %c0_12] : memref<8x128x128xbf16, #tpu.memory_space<vmem>>, vector<1x128x128xbf16>
    %20 = vector.shape_cast %19 : vector<1x128x128xbf16> to vector<128x128xbf16>
    %cst_13 = arith.constant dense<0.000000e+00> : vector<8x128xf32>
    %21 = tpu.matmul %18, %20, %cst_13 {dimension_numbers = #tpu.dot_dimension_numbers<[1], [0], [0], [1], [0, 0, 1, 1], [], []>} : vector<8x128xbf16>, vector<128x128xbf16>, vector<8x128xf32> -> vector<8x128xf32>
    %22 = arith.addf %16, %21 : vector<8x128xf32>
    %23 = vector.extract_strided_slice %9 {offsets = [0, 2, 0], sizes = [8, 1, 128], strides = [1, 1, 1]} : vector<8x8x128xbf16> to vector<8x1x128xbf16>
    %24 = vector.shape_cast %23 : vector<8x1x128xbf16> to vector<8x128xbf16>
    %c2 = arith.constant 2 : index
    %c0_14 = arith.constant 0 : index
    %c0_15 = arith.constant 0 : index
    %25 = vector.load %arg4[%c2, %c0_14, %c0_15] : memref<8x128x128xbf16, #tpu.memory_space<vmem>>, vector<1x128x128xbf16>
    %26 = vector.shape_cast %25 : vector<1x128x128xbf16> to vector<128x128xbf16>
    %cst_16 = arith.constant dense<0.000000e+00> : vector<8x128xf32>
    %27 = tpu.matmul %24, %26, %cst_16 {dimension_numbers = #tpu.dot_dimension_numbers<[1], [0], [0], [1], [0, 0, 1, 1], [], []>} : vector<8x128xbf16>, vector<128x128xbf16>, vector<8x128xf32> -> vector<8x128xf32>
    %28 = arith.addf %22, %27 : vector<8x128xf32>
    %29 = vector.extract_strided_slice %9 {offsets = [0, 3, 0], sizes = [8, 1, 128], strides = [1, 1, 1]} : vector<8x8x128xbf16> to vector<8x1x128xbf16>
    %30 = vector.shape_cast %29 : vector<8x1x128xbf16> to vector<8x128xbf16>
    %c3 = arith.constant 3 : index
    %c0_17 = arith.constant 0 : index
    %c0_18 = arith.constant 0 : index
    %31 = vector.load %arg4[%c3, %c0_17, %c0_18] : memref<8x128x128xbf16, #tpu.memory_space<vmem>>, vector<1x128x128xbf16>
    %32 = vector.shape_cast %31 : vector<1x128x128xbf16> to vector<128x128xbf16>
    %cst_19 = arith.constant dense<0.000000e+00> : vector<8x128xf32>
    %33 = tpu.matmul %30, %32, %cst_19 {dimension_numbers = #tpu.dot_dimension_numbers<[1], [0], [0], [1], [0, 0, 1, 1], [], []>} : vector<8x128xbf16>, vector<128x128xbf16>, vector<8x128xf32> -> vector<8x128xf32>
    %34 = arith.addf %28, %33 : vector<8x128xf32>
    %35 = vector.extract_strided_slice %9 {offsets = [0, 4, 0], sizes = [8, 1, 128], strides = [1, 1, 1]} : vector<8x8x128xbf16> to vector<8x1x128xbf16>
    %36 = vector.shape_cast %35 : vector<8x1x128xbf16> to vector<8x128xbf16>
    %c4 = arith.constant 4 : index
    %c0_20 = arith.constant 0 : index
    %c0_21 = arith.constant 0 : index
    %37 = vector.load %arg4[%c4, %c0_20, %c0_21] : memref<8x128x128xbf16, #tpu.memory_space<vmem>>, vector<1x128x128xbf16>
    %38 = vector.shape_cast %37 : vector<1x128x128xbf16> to vector<128x128xbf16>
    %cst_22 = arith.constant dense<0.000000e+00> : vector<8x128xf32>
    %39 = tpu.matmul %36, %38, %cst_22 {dimension_numbers = #tpu.dot_dimension_numbers<[1], [0], [0], [1], [0, 0, 1, 1], [], []>} : vector<8x128xbf16>, vector<128x128xbf16>, vector<8x128xf32> -> vector<8x128xf32>
    %40 = arith.addf %34, %39 : vector<8x128xf32>
    %41 = vector.extract_strided_slice %9 {offsets = [0, 5, 0], sizes = [8, 1, 128], strides = [1, 1, 1]} : vector<8x8x128xbf16> to vector<8x1x128xbf16>
    %42 = vector.shape_cast %41 : vector<8x1x128xbf16> to vector<8x128xbf16>
    %c5 = arith.constant 5 : index
    %c0_23 = arith.constant 0 : index
    %c0_24 = arith.constant 0 : index
    %43 = vector.load %arg4[%c5, %c0_23, %c0_24] : memref<8x128x128xbf16, #tpu.memory_space<vmem>>, vector<1x128x128xbf16>
    %44 = vector.shape_cast %43 : vector<1x128x128xbf16> to vector<128x128xbf16>
    %cst_25 = arith.constant dense<0.000000e+00> : vector<8x128xf32>
    %45 = tpu.matmul %42, %44, %cst_25 {dimension_numbers = #tpu.dot_dimension_numbers<[1], [0], [0], [1], [0, 0, 1, 1], [], []>} : vector<8x128xbf16>, vector<128x128xbf16>, vector<8x128xf32> -> vector<8x128xf32>
    %46 = arith.addf %40, %45 : vector<8x128xf32>
    %47 = vector.extract_strided_slice %9 {offsets = [0, 6, 0], sizes = [8, 1, 128], strides = [1, 1, 1]} : vector<8x8x128xbf16> to vector<8x1x128xbf16>
    %48 = vector.shape_cast %47 : vector<8x1x128xbf16> to vector<8x128xbf16>
    %c6 = arith.constant 6 : index
    %c0_26 = arith.constant 0 : index
    %c0_27 = arith.constant 0 : index
    %49 = vector.load %arg4[%c6, %c0_26, %c0_27] : memref<8x128x128xbf16, #tpu.memory_space<vmem>>, vector<1x128x128xbf16>
    %50 = vector.shape_cast %49 : vector<1x128x128xbf16> to vector<128x128xbf16>
    %cst_28 = arith.constant dense<0.000000e+00> : vector<8x128xf32>
    %51 = tpu.matmul %48, %50, %cst_28 {dimension_numbers = #tpu.dot_dimension_numbers<[1], [0], [0], [1], [0, 0, 1, 1], [], []>} : vector<8x128xbf16>, vector<128x128xbf16>, vector<8x128xf32> -> vector<8x128xf32>
    %52 = arith.addf %46, %51 : vector<8x128xf32>
    %53 = vector.extract_strided_slice %9 {offsets = [0, 7, 0], sizes = [8, 1, 128], strides = [1, 1, 1]} : vector<8x8x128xbf16> to vector<8x1x128xbf16>
    %54 = vector.shape_cast %53 : vector<8x1x128xbf16> to vector<8x128xbf16>
    %c7 = arith.constant 7 : index
    %c0_29 = arith.constant 0 : index
    %c0_30 = arith.constant 0 : index
    %55 = vector.load %arg4[%c7, %c0_29, %c0_30] : memref<8x128x128xbf16, #tpu.memory_space<vmem>>, vector<1x128x128xbf16>
    %56 = vector.shape_cast %55 : vector<1x128x128xbf16> to vector<128x128xbf16>
    %cst_31 = arith.constant dense<0.000000e+00> : vector<8x128xf32>
    %57 = tpu.matmul %54, %56, %cst_31 {dimension_numbers = #tpu.dot_dimension_numbers<[1], [0], [0], [1], [0, 0, 1, 1], [], []>} : vector<8x128xbf16>, vector<128x128xbf16>, vector<8x128xf32> -> vector<8x128xf32>
    %58 = arith.addf %52, %57 : vector<8x128xf32>
    %c0_32 = arith.constant 0 : index
    %c0_33 = arith.constant 0 : index
    %59 = vector.load %arg5[%c0_32, %c0_33] : memref<1x128xf32, #tpu.memory_space<vmem>>, vector<1x128xf32>
    %60 = vector.broadcast %59 : vector<1x128xf32> to vector<8x128xf32>
    %61 = arith.addf %58, %60 : vector<8x128xf32>
    %c0_34 = arith.constant 0 : index
    %c0_35 = arith.constant 0 : index
    %62 = vector.load %arg6[%c0_34, %c0_35] : memref<8x128xf32, #tpu.memory_space<vmem>>, vector<8x128xf32>
    tpu.vector_store %arg6[%c0_34, %c0_35], %61 {strides = array<i32>} : memref<8x128xf32, #tpu.memory_space<vmem>>, vector<8x128xf32>,
    return
  }
  func.func @transform_0(%arg0: i32) -> (i32, i32, i32) {
    %c0_i32 = arith.constant 0 : i32
    %c0_i32_0 = arith.constant 0 : i32
    %c0_i32_1 = arith.constant 0 : i32
    return %arg0, %c0_i32, %c0_i32_0 : i32, i32, i32
  }
  func.func @transform_1(%arg0: i32) -> (i32, i32) {
    %c0_i32 = arith.constant 0 : i32
    %c0_i32_0 = arith.constant 0 : i32
    %c0_i32_1 = arith.constant 0 : i32
    return %c0_i32, %c0_i32_0 : i32, i32
  }
  func.func @transform_2(%arg0: i32) -> (i32, i32) {
    %c0_i32 = arith.constant 0 : i32
    %c0_i32_0 = arith.constant 0 : i32
    %c0_i32_1 = arith.constant 0 : i32
    return %c0_i32, %c0_i32_0 : i32, i32
  }
  func.func @transform_3(%arg0: i32) -> (i32, i32, i32) {
    %c0_i32 = arith.constant 0 : i32
    %c0_i32_0 = arith.constant 0 : i32
    %c0_i32_1 = arith.constant 0 : i32
    %c0_i32_2 = arith.constant 0 : i32
    return %c0_i32, %c0_i32_0, %c0_i32_1 : i32, i32, i32
  }
  func.func @transform_4(%arg0: i32) -> (i32, i32) {
    %c0_i32 = arith.constant 0 : i32
    %c0_i32_0 = arith.constant 0 : i32
    %c0_i32_1 = arith.constant 0 : i32
    return %c0_i32, %c0_i32_0 : i32, i32
  }
  func.func @transform_5(%arg0: i32) -> (i32, i32) {
    %c0_i32 = arith.constant 0 : i32
    %c0_i32_0 = arith.constant 0 : i32
    return %arg0, %c0_i32 : i32, i32
  }
}

</mosaic_0001>

<llo_original>
// kernel: tpu_custom_call.1
$region0: #{tpu_custom_call.1}
  #allocation0 [shape = 'u32[]', space=smem, size = 0x4, offset = 0x4, fixed_abs, tag = 'smem constant byte address 0x4 - core index']
  #allocation1 [shape = 'u32[72,128]{1,0:T(1,128)}', space=vmem, size = 0x9000, scoped, tag = 'internal scratch']
  %s0 = inlined_call_operand.hbm [shape: f32[8,8,64], index: 0, kind: input, shape index: {}]
  %s1 = inlined_call_operand.hbm [shape: bf16[64,128], index: 1, kind: input, shape index: {}]
  %s2 = inlined_call_operand.vmem [shape: f32[1,128], index: 2, kind: input, shape index: {}]
  %s3 = inlined_call_operand.hbm [shape: bf16[8,128,128], index: 3, kind: input, shape index: {}]
  %s4 = inlined_call_operand.vmem [shape: f32[1,128], index: 4, kind: input, shape index: {}]
  %s5 = inlined_call_operand.hbm [shape: f32[8,128], index: 5, kind: output, shape index: {}]
  %s6 = sld [smem:[#allocation0]]
  $region42: #{tpu_custom_call.1} parent=0
    _
  %s8 = ssub.s32 1, %s6
  %s9 = scalar_select 0, %s8, %s6
  $region1: #{tpu_custom_call.1} parent=0
    #allocation2 [shape = 'u8[32768]{0}', space=vmem, size = 0x8000, scoped, tag = 'input window, operand 0, single buffered']
    #allocation3 [shape = 's32[1]{0}', space=sflag, size = 0x4, scoped, tag = 'scoped memory for tpu_custom_call.1']
    #allocation4 [shape = 's32[1]{0}', space=sflag, size = 0x4, scoped, tag = 'scoped memory for tpu_custom_call.1']
    #allocation5 [shape = 'u8[16384]{0}', space=vmem, size = 0x4000, scoped, tag = 'input window, operand 1, single buffered']
    #allocation6 [shape = 's32[1]{0}', space=sflag, size = 0x4, scoped, tag = 'scoped memory for tpu_custom_call.1']
    #allocation7 [shape = 'u8[262144]{0}', space=vmem, size = 0x40000, scoped, tag = 'input window, operand 3, single buffered']
    #allocation8 [shape = 'u8[4096]{0}', space=vmem, size = 0x1000, scoped, tag = 'output window, operand 0, single buffered']
    %10 = vsyncpa [#allocation3], 0
    %11 = vsyncpa [#allocation6], 0
    %12 = vsyncpa [#allocation4], 0
    // Predicated region
    $region2: #{tpu_custom_call.1} parent=1 // pred_check
      _
    $region3: #{tpu_custom_call.1} parent=1 // pred_check_branch
      %14 = sbr.rel (0) target = $region5
    $region4: #{tpu_custom_call.1} parent=1 // pred_region
      %16 = vsyncadd [#allocation3], 0
      %s17 = sshll.u32 %s0, 4
      %s18 = int_to_ptr.hbm [resolvable:$true] %s17
      %s19 = sshll.u32 [#allocation2], 4
      %s20 = int_to_ptr.vmem [resolvable:$true] %s19
      %25 = dma.hbm_to_vmem [thread:$0]  %s18, 1024, %s20, [#allocation3], 128, 128, 8
    $region5: #{tpu_custom_call.1} parent=1 // pred_fallthru
      _
    // Predicated region
    $region6: #{tpu_custom_call.1} parent=1 // pred_check
      _
    $region7: #{tpu_custom_call.1} parent=1 // pred_check_branch
      %27 = sbr.rel (0) target = $region9
    $region8: #{tpu_custom_call.1} parent=1 // pred_region
      %29 = vsyncadd [#allocation6], 0
      %s30 = sshll.u32 %s1, 4
      %s31 = int_to_ptr.hbm [resolvable:$true] %s30
      %s32 = sshll.u32 [#allocation5], 4
      %s33 = int_to_ptr.vmem [resolvable:$true] %s32
      %38 = dma.hbm_to_vmem [thread:$0]  %s31, 512, %s33, [#allocation6], 64, 64, 4
    $region9: #{tpu_custom_call.1} parent=1 // pred_fallthru
      _
    // Predicated region
    $region10: #{tpu_custom_call.1} parent=1 // pred_check
      _
    $region11: #{tpu_custom_call.1} parent=1 // pred_check_branch
      %40 = sbr.rel (0) target = $region13
    $region12: #{tpu_custom_call.1} parent=1 // pred_region
      _
    $region13: #{tpu_custom_call.1} parent=1 // pred_fallthru
      _
    // Predicated region
    $region14: #{tpu_custom_call.1} parent=1 // pred_check
      _
    $region15: #{tpu_custom_call.1} parent=1 // pred_check_branch
      %42 = sbr.rel (0) target = $region17
    $region16: #{tpu_custom_call.1} parent=1 // pred_region
      %44 = vsyncadd [#allocation6], 0
      %s45 = sshll.u32 %s3, 4
      %s46 = int_to_ptr.hbm [resolvable:$true] %s45
      %s47 = sshll.u32 [#allocation7], 4
      %s48 = int_to_ptr.vmem [resolvable:$true] %s47
      %53 = dma.hbm_to_vmem [thread:$0]  %s46, 8192, %s48, [#allocation6], 64, 64, 4
    $region17: #{tpu_custom_call.1} parent=1 // pred_fallthru
      _
    // Predicated region
    $region18: #{tpu_custom_call.1} parent=1 // pred_check
      _
    $region19: #{tpu_custom_call.1} parent=1 // pred_check_branch
      %55 = sbr.rel (0) target = $region21
    $region20: #{tpu_custom_call.1} parent=1 // pred_region
      _
    $region21: #{tpu_custom_call.1} parent=1 // pred_fallthru
      _
    // Predicated region
    $region22: #{tpu_custom_call.1} parent=1 // pred_check
      _
    $region23: #{tpu_custom_call.1} parent=1 // pred_check_branch
      %57 = sbr.rel (0) target = $region25
    $region24: #{tpu_custom_call.1} parent=1 // pred_region
      %59 = dma.done [#allocation3], 1024
    $region25: #{tpu_custom_call.1} parent=1 // pred_fallthru
      _
    // Predicated region
    $region26: #{tpu_custom_call.1} parent=1 // pred_check
      _
    $region27: #{tpu_custom_call.1} parent=1 // pred_check_branch
      %61 = sbr.rel (0) target = $region29
    $region28: #{tpu_custom_call.1} parent=1 // pred_region
      %63 = dma.done [#allocation6], 512
    $region29: #{tpu_custom_call.1} parent=1 // pred_fallthru
      _
    // Predicated region
    $region30: #{tpu_custom_call.1} parent=1 // pred_check
      _
    $region31: #{tpu_custom_call.1} parent=1 // pred_check_branch
      %65 = sbr.rel (0) target = $region33
    $region32: #{tpu_custom_call.1} parent=1 // pred_region
      %67 = dma.done [#allocation6], 8192
    $region33: #{tpu_custom_call.1} parent=1 // pred_fallthru
      _
    %v69 = vld [vmem:[#allocation2] sm:$0xff]
    %v70 = vld [vmem:[#allocation2 + $0x8] sm:$0xff]
    %v71 = vld [vmem:[#allocation2 + $0x10] sm:$0xff]
    %v72 = vld [vmem:[#allocation2 + $0x18] sm:$0xff]
    %v73 = vld [vmem:[#allocation2 + $0x20] sm:$0xff]
    %v74 = vld [vmem:[#allocation2 + $0x28] sm:$0xff]
    %v75 = vld [vmem:[#allocation2 + $0x30] sm:$0xff]
    %v76 = vld [vmem:[#allocation2 + $0x38] sm:$0xff]
    %v77 = vpack.c.bf16 %v70, %v69
    %v78 = vpack.c.bf16 %v72, %v71
    %v79 = vpack.c.bf16 %v74, %v73
    %v80 = vpack.c.bf16 %v76, %v75
    %v81 = vld [vmem:[#allocation5] sm:$0xf]
    %v82 = vld [vmem:[#allocation5 + $0x4] sm:$0xf]
    %v83 = vld [vmem:[#allocation5 + $0x8] sm:$0xf]
    %v84 = vld [vmem:[#allocation5 + $0xc] sm:$0xf]
    %v85 = vld [vmem:[#allocation5 + $0x10] sm:$0xf]
    %v86 = vld [vmem:[#allocation5 + $0x14] sm:$0xf]
    %v87 = vld [vmem:[#allocation5 + $0x18] sm:$0xf]
    %v88 = vld [vmem:[#allocation5 + $0x1c] sm:$0xf]
    %v89 = vld [vmem:[%s2] sm:$0x1]
    %v91 = vperm.slane %v89, 0
    %v101 = vunpack.c.l.b16 %v81
    %v102 = vunpack.c.l.b16 %v82
    %v103 = vunpack.c.l.b16 %v83
    %v104 = vunpack.c.l.b16 %v84
    %v105 = vunpack.c.l.b16 %v85
    %v106 = vunpack.c.l.b16 %v86
    %v107 = vunpack.c.l.b16 %v87
    %v108 = vunpack.c.l.b16 %v88
    %v109 = vpack.c.b16 %v102, %v101
    %v110 = vpack.c.b16 %v104, %v103
    %v111 = vpack.c.b16 %v106, %v105
    %v112 = vpack.c.b16 %v108, %v107
    %vm117 = vcmask 523264
    %v119 = vsel %vm117, %v77, 0
    %v122 = vsel %vm117, %v78, 0
    %v125 = vsel %vm117, %v79, 0
    %v128 = vsel %vm117, %v80, 0
    %130 = vmatpush.bf16.msra.mxu0 0
    %131 = vmatpush.bf16.msra.mxu0 0
    %132 = vmatpush.bf16.msra.mxu0 0
    %133 = vmatpush.bf16.msra.mxu0 0
    %134 = vmatpush.bf16.msra.mxu0 %v112
    %135 = vmatpush.bf16.msra.mxu0 %v111
    %136 = vmatpush.bf16.msra.mxu0 %v110
    %137 = vmatpush.bf16.msra.mxu0 %v109
    %138 = vmatmul.bf16.gmra.mxu0 %v119
    %v139 = vpop.f32.mrf.mxu0
    %v140 = vadd.f32 %v91, %v139
    %v141 = vpop.f32.mrf.mxu0
    %v142 = vadd.f32 %v91, %v141
    %143 = vmatmul.bf16.gmra.mxu0 %v122
    %v144 = vpop.f32.mrf.mxu0
    %v145 = vadd.f32 %v91, %v144
    %v146 = vpop.f32.mrf.mxu0
    %v147 = vadd.f32 %v91, %v146
    %148 = vmatmul.bf16.gmra.mxu0 %v125
    %v149 = vpop.f32.mrf.mxu0
    %v150 = vadd.f32 %v91, %v149
    %v151 = vpop.f32.mrf.mxu0
    %v152 = vadd.f32 %v91, %v151
    %153 = vmatmul.bf16.gmra.mxu0 %v128
    %v154 = vpop.f32.mrf.mxu0
    %v155 = vadd.f32 %v91, %v154
    %v156 = vpop.f32.mrf.mxu0
    %v157 = vadd.f32 %v91, %v156
    %158 = vdwg.mxu0
    %v159 = vpack.c.bf16 %v140, %v140
    %v160 = vpack.c.bf16 %v142, %v142
    %v161 = vpack.c.bf16 %v145, %v145
    %v162 = vpack.c.bf16 %v147, %v147
    %v163 = vpack.c.bf16 %v150, %v150
    %v164 = vpack.c.bf16 %v152, %v152
    %v165 = vpack.c.bf16 %v155, %v155
    %v166 = vpack.c.bf16 %v157, %v157
    %v167 = vld [vmem:[#allocation7] sm:$0xf]
    %v168 = vld [vmem:[#allocation7 + $0x4] sm:$0xf]
    %v169 = vld [vmem:[#allocation7 + $0x8] sm:$0xf]
    %v170 = vld [vmem:[#allocation7 + $0xc] sm:$0xf]
    %v171 = vld [vmem:[#allocation7 + $0x10] sm:$0xf]
    %v172 = vld [vmem:[#allocation7 + $0x14] sm:$0xf]
    %v173 = vld [vmem:[#allocation7 + $0x18] sm:$0xf]
    %v174 = vld [vmem:[#allocation7 + $0x1c] sm:$0xf]
    %v175 = vld [vmem:[#allocation7 + $0x20] sm:$0xf]
    %v176 = vld [vmem:[#allocation7 + $0x24] sm:$0xf]
    %v177 = vld [vmem:[#allocation7 + $0x28] sm:$0xf]
    %v178 = vld [vmem:[#allocation7 + $0x2c] sm:$0xf]
    %v179 = vld [vmem:[#allocation7 + $0x30] sm:$0xf]
    %v180 = vld [vmem:[#allocation7 + $0x34] sm:$0xf]
    %v181 = vld [vmem:[#allocation7 + $0x38] sm:$0xf]
    %v182 = vld [vmem:[#allocation7 + $0x3c] sm:$0xf]
    %s183 = scalar_lea.vmem [#allocation7], 64
    %v184 = vld [vmem:[%s183] sm:$0xf]
    %v185 = vld [vmem:[%s183 + $0x4] sm:$0xf]
    %v186 = vld [vmem:[%s183 + $0x8] sm:$0xf]
    %v187 = vld [vmem:[%s183 + $0xc] sm:$0xf]
    %v188 = vld [vmem:[%s183 + $0x10] sm:$0xf]
    %v189 = vld [vmem:[%s183 + $0x14] sm:$0xf]
    %v190 = vld [vmem:[%s183 + $0x18] sm:$0xf]
    %v191 = vld [vmem:[%s183 + $0x1c] sm:$0xf]
    %v192 = vld [vmem:[%s183 + $0x20] sm:$0xf]
    %v193 = vld [vmem:[%s183 + $0x24] sm:$0xf]
    %v194 = vld [vmem:[%s183 + $0x28] sm:$0xf]
    %v195 = vld [vmem:[%s183 + $0x2c] sm:$0xf]
    %v196 = vld [vmem:[%s183 + $0x30] sm:$0xf]
    %v197 = vld [vmem:[%s183 + $0x34] sm:$0xf]
    %v198 = vld [vmem:[%s183 + $0x38] sm:$0xf]
    %v199 = vld [vmem:[%s183 + $0x3c] sm:$0xf]
    %v208 = vunpack.c.l.b16 %v159
    %v209 = vunpack.c.l.b16 %v160
    %v210 = vunpack.c.l.b16 %v161
    %v211 = vunpack.c.l.b16 %v162
    %v212 = vunpack.c.l.b16 %v163
    %v213 = vunpack.c.l.b16 %v164
    %v214 = vunpack.c.l.b16 %v165
    %v215 = vunpack.c.l.b16 %v166
    %v216 = vpack.c.b16 %v208, %v208
    %v217 = vpack.c.b16 %v209, %v209
    %v218 = vpack.c.b16 %v210, %v210
    %v219 = vpack.c.b16 %v211, %v211
    %v220 = vpack.c.b16 %v212, %v212
    %v221 = vpack.c.b16 %v213, %v213
    %v222 = vpack.c.b16 %v214, %v214
    %v223 = vpack.c.b16 %v215, %v215
    %v224 = vunpack.c.l.b16 %v216
    %v225 = vunpack.c.l.b16 %v217
    %v226 = vunpack.c.l.b16 %v218
    %v227 = vunpack.c.l.b16 %v219
    %v228 = vunpack.c.l.b16 %v220
    %v229 = vunpack.c.l.b16 %v221
    %v230 = vunpack.c.l.b16 %v222
    %v231 = vunpack.c.l.b16 %v223
    %v232 = vrot.slane %v224, 1
    %vm233 = vcmask 1041409
    %v234 = vsel %vm233, %v225, %v232
    %v235 = vrot.slane %v226, 7
    %vm236 = vcmask 1042434
    %v237 = vsel %vm236, %v235, %v234
    %v238 = vrot.slane %v227, 6
    %vm239 = vcmask 1043459
    %v240 = vsel %vm239, %v238, %v237
    %v241 = vrot.slane %v228, 5
    %vm242 = vcmask 1044484
    %v243 = vsel %vm242, %v241, %v240
    %v244 = vrot.slane %v229, 4
    %vm245 = vcmask 1045509
    %v246 = vsel %vm245, %v244, %v243
    %v247 = vrot.slane %v230, 3
    %vm248 = vcmask 1046534
    %v249 = vsel %vm248, %v247, %v246
    %v250 = vrot.slane %v231, 2
    %vm251 = vcmask 1047559
    %v252 = vsel %vm251, %v250, %v249
    %v253 = vpack.c.b16 %v252, %v252
    %v271 = vunpack.c.l.b16 %v184
    %v272 = vunpack.c.l.b16 %v185
    %v273 = vunpack.c.l.b16 %v186
    %v274 = vunpack.c.l.b16 %v187
    %v275 = vunpack.c.l.b16 %v188
    %v276 = vunpack.c.l.b16 %v189
    %v277 = vunpack.c.l.b16 %v190
    %v278 = vunpack.c.l.b16 %v191
    %v279 = vunpack.c.l.b16 %v192
    %v280 = vunpack.c.l.b16 %v193
    %v281 = vunpack.c.l.b16 %v194
    %v282 = vunpack.c.l.b16 %v195
    %v283 = vunpack.c.l.b16 %v196
    %v284 = vunpack.c.l.b16 %v197
    %v285 = vunpack.c.l.b16 %v198
    %v286 = vunpack.c.l.b16 %v199
    %v287 = vpack.c.b16 %v272, %v271
    %v288 = vpack.c.b16 %v274, %v273
    %v289 = vpack.c.b16 %v276, %v275
    %v290 = vpack.c.b16 %v278, %v277
    %v291 = vpack.c.b16 %v280, %v279
    %v292 = vpack.c.b16 %v282, %v281
    %v293 = vpack.c.b16 %v284, %v283
    %v294 = vpack.c.b16 %v286, %v285
    %303 = vmatpush.bf16.msra.mxu0 %v294
    %304 = vmatpush.bf16.msra.mxu0 %v293
    %305 = vmatpush.bf16.msra.mxu0 %v292
    %306 = vmatpush.bf16.msra.mxu0 %v291
    %307 = vmatpush.bf16.msra.mxu0 %v290
    %308 = vmatpush.bf16.msra.mxu0 %v289
    %309 = vmatpush.bf16.msra.mxu0 %v288
    %310 = vmatpush.bf16.msra.mxu0 %v287
    %311 = vmatmul.bf16.gmra.mxu0 %v253
    %v312 = vpop.f32.mrf.mxu0
    %v313 = vadd.f32 0.0, %v312
    %v314 = vpop.f32.mrf.mxu0
    %315 = vdwg.mxu0
    %v316 = vrot.slane %v225, 7
    %v317 = vsel %vm233, %v316, %v224
    %v318 = vrot.slane %v226, 6
    %v319 = vsel %vm236, %v318, %v317
    %v320 = vrot.slane %v227, 5
    %v321 = vsel %vm239, %v320, %v319
    %v322 = vrot.slane %v228, 4
    %v323 = vsel %vm242, %v322, %v321
    %v324 = vrot.slane %v229, 3
    %v325 = vsel %vm245, %v324, %v323
    %v326 = vrot.slane %v230, 2
    %v327 = vsel %vm248, %v326, %v325
    %v328 = vrot.slane %v231, 1
    %v329 = vsel %vm251, %v328, %v327
    %v330 = vpack.c.b16 %v329, %v329
    %v348 = vunpack.c.l.b16 %v167
    %v349 = vunpack.c.l.b16 %v168
    %v350 = vunpack.c.l.b16 %v169
    %v351 = vunpack.c.l.b16 %v170
    %v352 = vunpack.c.l.b16 %v171
    %v353 = vunpack.c.l.b16 %v172
    %v354 = vunpack.c.l.b16 %v173
    %v355 = vunpack.c.l.b16 %v174
    %v356 = vunpack.c.l.b16 %v175
    %v357 = vunpack.c.l.b16 %v176
    %v358 = vunpack.c.l.b16 %v177
    %v359 = vunpack.c.l.b16 %v178
    %v360 = vunpack.c.l.b16 %v179
    %v361 = vunpack.c.l.b16 %v180
    %v362 = vunpack.c.l.b16 %v181
    %v363 = vunpack.c.l.b16 %v182
    %v364 = vpack.c.b16 %v349, %v348
    %v365 = vpack.c.b16 %v351, %v350
    %v366 = vpack.c.b16 %v353, %v352
    %v367 = vpack.c.b16 %v355, %v354
    %v368 = vpack.c.b16 %v357, %v356
    %v369 = vpack.c.b16 %v359, %v358
    %v370 = vpack.c.b16 %v361, %v360
    %v371 = vpack.c.b16 %v363, %v362
    %380 = vmatpush.bf16.msra.mxu0 %v371
    %381 = vmatpush.bf16.msra.mxu0 %v370
    %382 = vmatpush.bf16.msra.mxu0 %v369
    %383 = vmatpush.bf16.msra.mxu0 %v368
    %384 = vmatpush.bf16.msra.mxu0 %v367
    %385 = vmatpush.bf16.msra.mxu0 %v366
    %386 = vmatpush.bf16.msra.mxu0 %v365
    %387 = vmatpush.bf16.msra.mxu0 %v364
    %388 = vmatmul.bf16.gmra.mxu0 %v330
    %v389 = vpop.f32.mrf.mxu0
    %v390 = vadd.f32 %v313, %v389
    %v391 = vpop.f32.mrf.mxu0
    %392 = vdwg.mxu0
    %s393 = scalar_lea.vmem [#allocation7], 128
    %v394 = vld [vmem:[%s393] sm:$0xf]
    %v395 = vld [vmem:[%s393 + $0x4] sm:$0xf]
    %v396 = vld [vmem:[%s393 + $0x8] sm:$0xf]
    %v397 = vld [vmem:[%s393 + $0xc] sm:$0xf]
    %v398 = vld [vmem:[%s393 + $0x10] sm:$0xf]
    %v399 = vld [vmem:[%s393 + $0x14] sm:$0xf]
    %v400 = vld [vmem:[%s393 + $0x18] sm:$0xf]
    %v401 = vld [vmem:[%s393 + $0x1c] sm:$0xf]
    %v402 = vld [vmem:[%s393 + $0x20] sm:$0xf]
    %v403 = vld [vmem:[%s393 + $0x24] sm:$0xf]
    %v404 = vld [vmem:[%s393 + $0x28] sm:$0xf]
    %v405 = vld [vmem:[%s393 + $0x2c] sm:$0xf]
    %v406 = vld [vmem:[%s393 + $0x30] sm:$0xf]
    %v407 = vld [vmem:[%s393 + $0x34] sm:$0xf]
    %v408 = vld [vmem:[%s393 + $0x38] sm:$0xf]
    %v409 = vld [vmem:[%s393 + $0x3c] sm:$0xf]
    %v410 = vrot.slane %v224, 2
    %v411 = vrot.slane %v225, 1
    %v412 = vsel %vm233, %v411, %v410
    %v413 = vsel %vm236, %v226, %v412
    %v414 = vrot.slane %v227, 7
    %v415 = vsel %vm239, %v414, %v413
    %v416 = vrot.slane %v228, 6
    %v417 = vsel %vm242, %v416, %v415
    %v418 = vrot.slane %v229, 5
    %v419 = vsel %vm245, %v418, %v417
    %v420 = vrot.slane %v230, 4
    %v421 = vsel %vm248, %v420, %v419
    %v422 = vrot.slane %v231, 3
    %v423 = vsel %vm251, %v422, %v421
    %v424 = vpack.c.b16 %v423, %v423
    %v442 = vunpack.c.l.b16 %v394
    %v443 = vunpack.c.l.b16 %v395
    %v444 = vunpack.c.l.b16 %v396
    %v445 = vunpack.c.l.b16 %v397
    %v446 = vunpack.c.l.b16 %v398
    %v447 = vunpack.c.l.b16 %v399
    %v448 = vunpack.c.l.b16 %v400
    %v449 = vunpack.c.l.b16 %v401
    %v450 = vunpack.c.l.b16 %v402
    %v451 = vunpack.c.l.b16 %v403
    %v452 = vunpack.c.l.b16 %v404
    %v453 = vunpack.c.l.b16 %v405
    %v454 = vunpack.c.l.b16 %v406
    %v455 = vunpack.c.l.b16 %v407
    %v456 = vunpack.c.l.b16 %v408
    %v457 = vunpack.c.l.b16 %v409
    %v458 = vpack.c.b16 %v443, %v442
    %v459 = vpack.c.b16 %v445, %v444
    %v460 = vpack.c.b16 %v447, %v446
    %v461 = vpack.c.b16 %v449, %v448
    %v462 = vpack.c.b16 %v451, %v450
    %v463 = vpack.c.b16 %v453, %v452
    %v464 = vpack.c.b16 %v455, %v454
    %v465 = vpack.c.b16 %v457, %v456
    %474 = vmatpush.bf16.msra.mxu0 %v465
    %475 = vmatpush.bf16.msra.mxu0 %v464
    %476 = vmatpush.bf16.msra.mxu0 %v463
    %477 = vmatpush.bf16.msra.mxu0 %v462
    %478 = vmatpush.bf16.msra.mxu0 %v461
    %479 = vmatpush.bf16.msra.mxu0 %v460
    %480 = vmatpush.bf16.msra.mxu0 %v459
    %481 = vmatpush.bf16.msra.mxu0 %v458
    %482 = vmatmul.bf16.gmra.mxu0 %v424
    %v483 = vpop.f32.mrf.mxu0
    %v484 = vadd.f32 0.0, %v483
    %v485 = vpop.f32.mrf.mxu0
    %486 = vdwg.mxu0
    %v487 = vadd.f32 %v390, %v484
    %s488 = scalar_lea.vmem [#allocation7], 192
    %v489 = vld [vmem:[%s488] sm:$0xf]
    %v490 = vld [vmem:[%s488 + $0x4] sm:$0xf]
    %v491 = vld [vmem:[%s488 + $0x8] sm:$0xf]
    %v492 = vld [vmem:[%s488 + $0xc] sm:$0xf]
    %v493 = vld [vmem:[%s488 + $0x10] sm:$0xf]
    %v494 = vld [vmem:[%s488 + $0x14] sm:$0xf]
    %v495 = vld [vmem:[%s488 + $0x18] sm:$0xf]
    %v496 = vld [vmem:[%s488 + $0x1c] sm:$0xf]
    %v497 = vld [vmem:[%s488 + $0x20] sm:$0xf]
    %v498 = vld [vmem:[%s488 + $0x24] sm:$0xf]
    %v499 = vld [vmem:[%s488 + $0x28] sm:$0xf]
    %v500 = vld [vmem:[%s488 + $0x2c] sm:$0xf]
    %v501 = vld [vmem:[%s488 + $0x30] sm:$0xf]
    %v502 = vld [vmem:[%s488 + $0x34] sm:$0xf]
    %v503 = vld [vmem:[%s488 + $0x38] sm:$0xf]
    %v504 = vld [vmem:[%s488 + $0x3c] sm:$0xf]
    %v505 = vrot.slane %v224, 3
    %v506 = vrot.slane %v225, 2
    %v507 = vsel %vm233, %v506, %v505
    %v508 = vrot.slane %v226, 1
    %v509 = vsel %vm236, %v508, %v507
    %v510 = vsel %vm239, %v227, %v509
    %v511 = vrot.slane %v228, 7
    %v512 = vsel %vm242, %v511, %v510
    %v513 = vrot.slane %v229, 6
    %v514 = vsel %vm245, %v513, %v512
    %v515 = vrot.slane %v230, 5
    %v516 = vsel %vm248, %v515, %v514
    %v517 = vrot.slane %v231, 4
    %v518 = vsel %vm251, %v517, %v516
    %v519 = vpack.c.b16 %v518, %v518
    %v537 = vunpack.c.l.b16 %v489
    %v538 = vunpack.c.l.b16 %v490
    %v539 = vunpack.c.l.b16 %v491
    %v540 = vunpack.c.l.b16 %v492
    %v541 = vunpack.c.l.b16 %v493
    %v542 = vunpack.c.l.b16 %v494
    %v543 = vunpack.c.l.b16 %v495
    %v544 = vunpack.c.l.b16 %v496
    %v545 = vunpack.c.l.b16 %v497
    %v546 = vunpack.c.l.b16 %v498
    %v547 = vunpack.c.l.b16 %v499
    %v548 = vunpack.c.l.b16 %v500
    %v549 = vunpack.c.l.b16 %v501
    %v550 = vunpack.c.l.b16 %v502
    %v551 = vunpack.c.l.b16 %v503
    %v552 = vunpack.c.l.b16 %v504
    %v553 = vpack.c.b16 %v538, %v537
    %v554 = vpack.c.b16 %v540, %v539
    %v555 = vpack.c.b16 %v542, %v541
    %v556 = vpack.c.b16 %v544, %v543
    %v557 = vpack.c.b16 %v546, %v545
    %v558 = vpack.c.b16 %v548, %v547
    %v559 = vpack.c.b16 %v550, %v549
    %v560 = vpack.c.b16 %v552, %v551
    %569 = vmatpush.bf16.msra.mxu0 %v560
    %570 = vmatpush.bf16.msra.mxu0 %v559
    %571 = vmatpush.bf16.msra.mxu0 %v558
    %572 = vmatpush.bf16.msra.mxu0 %v557
    %573 = vmatpush.bf16.msra.mxu0 %v556
    %574 = vmatpush.bf16.msra.mxu0 %v555
    %575 = vmatpush.bf16.msra.mxu0 %v554
    %576 = vmatpush.bf16.msra.mxu0 %v553
    %577 = vmatmul.bf16.gmra.mxu0 %v519
    %v578 = vpop.f32.mrf.mxu0
    %v579 = vadd.f32 0.0, %v578
    %v580 = vpop.f32.mrf.mxu0
    %581 = vdwg.mxu0
    %v582 = vadd.f32 %v487, %v579
    %s583 = scalar_lea.vmem [#allocation7], 256
    %v584 = vld [vmem:[%s583] sm:$0xf]
    %v585 = vld [vmem:[%s583 + $0x4] sm:$0xf]
    %v586 = vld [vmem:[%s583 + $0x8] sm:$0xf]
    %v587 = vld [vmem:[%s583 + $0xc] sm:$0xf]
    %v588 = vld [vmem:[%s583 + $0x10] sm:$0xf]
    %v589 = vld [vmem:[%s583 + $0x14] sm:$0xf]
    %v590 = vld [vmem:[%s583 + $0x18] sm:$0xf]
    %v591 = vld [vmem:[%s583 + $0x1c] sm:$0xf]
    %v592 = vld [vmem:[%s583 + $0x20] sm:$0xf]
    %v593 = vld [vmem:[%s583 + $0x24] sm:$0xf]
    %v594 = vld [vmem:[%s583 + $0x28] sm:$0xf]
    %v595 = vld [vmem:[%s583 + $0x2c] sm:$0xf]
    %v596 = vld [vmem:[%s583 + $0x30] sm:$0xf]
    %v597 = vld [vmem:[%s583 + $0x34] sm:$0xf]
    %v598 = vld [vmem:[%s583 + $0x38] sm:$0xf]
    %v599 = vld [vmem:[%s583 + $0x3c] sm:$0xf]
    %v600 = vrot.slane %v224, 4
    %v601 = vrot.slane %v225, 3
    %v602 = vsel %vm233, %v601, %v600
    %v603 = vrot.slane %v226, 2
    %v604 = vsel %vm236, %v603, %v602
    %v605 = vrot.slane %v227, 1
    %v606 = vsel %vm239, %v605, %v604
    %v607 = vsel %vm242, %v228, %v606
    %v608 = vrot.slane %v229, 7
    %v609 = vsel %vm245, %v608, %v607
    %v610 = vrot.slane %v230, 6
    %v611 = vsel %vm248, %v610, %v609
    %v612 = vrot.slane %v231, 5
    %v613 = vsel %vm251, %v612, %v611
    %v614 = vpack.c.b16 %v613, %v613
    %v632 = vunpack.c.l.b16 %v584
    %v633 = vunpack.c.l.b16 %v585
    %v634 = vunpack.c.l.b16 %v586
    %v635 = vunpack.c.l.b16 %v587
    %v636 = vunpack.c.l.b16 %v588
    %v637 = vunpack.c.l.b16 %v589
    %v638 = vunpack.c.l.b16 %v590
    %v639 = vunpack.c.l.b16 %v591
    %v640 = vunpack.c.l.b16 %v592
    %v641 = vunpack.c.l.b16 %v593
    %v642 = vunpack.c.l.b16 %v594
    %v643 = vunpack.c.l.b16 %v595
    %v644 = vunpack.c.l.b16 %v596
    %v645 = vunpack.c.l.b16 %v597
    %v646 = vunpack.c.l.b16 %v598
    %v647 = vunpack.c.l.b16 %v599
    %v648 = vpack.c.b16 %v633, %v632
    %v649 = vpack.c.b16 %v635, %v634
    %v650 = vpack.c.b16 %v637, %v636
    %v651 = vpack.c.b16 %v639, %v638
    %v652 = vpack.c.b16 %v641, %v640
    %v653 = vpack.c.b16 %v643, %v642
    %v654 = vpack.c.b16 %v645, %v644
    %v655 = vpack.c.b16 %v647, %v646
    %664 = vmatpush.bf16.msra.mxu0 %v655
    %665 = vmatpush.bf16.msra.mxu0 %v654
    %666 = vmatpush.bf16.msra.mxu0 %v653
    %667 = vmatpush.bf16.msra.mxu0 %v652
    %668 = vmatpush.bf16.msra.mxu0 %v651
    %669 = vmatpush.bf16.msra.mxu0 %v650
    %670 = vmatpush.bf16.msra.mxu0 %v649
    %671 = vmatpush.bf16.msra.mxu0 %v648
    %672 = vmatmul.bf16.gmra.mxu0 %v614
    %v673 = vpop.f32.mrf.mxu0
    %v674 = vadd.f32 0.0, %v673
    %v675 = vpop.f32.mrf.mxu0
    %676 = vdwg.mxu0
    %v677 = vadd.f32 %v582, %v674
    %s678 = scalar_lea.vmem [#allocation7], 320
    %v679 = vld [vmem:[%s678] sm:$0xf]
    %v680 = vld [vmem:[%s678 + $0x4] sm:$0xf]
    %v681 = vld [vmem:[%s678 + $0x8] sm:$0xf]
    %v682 = vld [vmem:[%s678 + $0xc] sm:$0xf]
    %v683 = vld [vmem:[%s678 + $0x10] sm:$0xf]
    %v684 = vld [vmem:[%s678 + $0x14] sm:$0xf]
    %v685 = vld [vmem:[%s678 + $0x18] sm:$0xf]
    %v686 = vld [vmem:[%s678 + $0x1c] sm:$0xf]
    %v687 = vld [vmem:[%s678 + $0x20] sm:$0xf]
    %v688 = vld [vmem:[%s678 + $0x24] sm:$0xf]
    %v689 = vld [vmem:[%s678 + $0x28] sm:$0xf]
    %v690 = vld [vmem:[%s678 + $0x2c] sm:$0xf]
    %v691 = vld [vmem:[%s678 + $0x30] sm:$0xf]
    %v692 = vld [vmem:[%s678 + $0x34] sm:$0xf]
    %v693 = vld [vmem:[%s678 + $0x38] sm:$0xf]
    %v694 = vld [vmem:[%s678 + $0x3c] sm:$0xf]
    %v695 = vrot.slane %v224, 5
    %v696 = vrot.slane %v225, 4
    %v697 = vsel %vm233, %v696, %v695
    %v698 = vrot.slane %v226, 3
    %v699 = vsel %vm236, %v698, %v697
    %v700 = vrot.slane %v227, 2
    %v701 = vsel %vm239, %v700, %v699
    %v702 = vrot.slane %v228, 1
    %v703 = vsel %vm242, %v702, %v701
    %v704 = vsel %vm245, %v229, %v703
    %v705 = vrot.slane %v230, 7
    %v706 = vsel %vm248, %v705, %v704
    %v707 = vrot.slane %v231, 6
    %v708 = vsel %vm251, %v707, %v706
    %v709 = vpack.c.b16 %v708, %v708
    %v727 = vunpack.c.l.b16 %v679
    %v728 = vunpack.c.l.b16 %v680
    %v729 = vunpack.c.l.b16 %v681
    %v730 = vunpack.c.l.b16 %v682
    %v731 = vunpack.c.l.b16 %v683
    %v732 = vunpack.c.l.b16 %v684
    %v733 = vunpack.c.l.b16 %v685
    %v734 = vunpack.c.l.b16 %v686
    %v735 = vunpack.c.l.b16 %v687
    %v736 = vunpack.c.l.b16 %v688
    %v737 = vunpack.c.l.b16 %v689
    %v738 = vunpack.c.l.b16 %v690
    %v739 = vunpack.c.l.b16 %v691
    %v740 = vunpack.c.l.b16 %v692
    %v741 = vunpack.c.l.b16 %v693
    %v742 = vunpack.c.l.b16 %v694
    %v743 = vpack.c.b16 %v728, %v727
    %v744 = vpack.c.b16 %v730, %v729
    %v745 = vpack.c.b16 %v732, %v731
    %v746 = vpack.c.b16 %v734, %v733
    %v747 = vpack.c.b16 %v736, %v735
    %v748 = vpack.c.b16 %v738, %v737
    %v749 = vpack.c.b16 %v740, %v739
    %v750 = vpack.c.b16 %v742, %v741
    %759 = vmatpush.bf16.msra.mxu0 %v750
    %760 = vmatpush.bf16.msra.mxu0 %v749
    %761 = vmatpush.bf16.msra.mxu0 %v748
    %762 = vmatpush.bf16.msra.mxu0 %v747
    %763 = vmatpush.bf16.msra.mxu0 %v746
    %764 = vmatpush.bf16.msra.mxu0 %v745
    %765 = vmatpush.bf16.msra.mxu0 %v744
    %766 = vmatpush.bf16.msra.mxu0 %v743
    %767 = vmatmul.bf16.gmra.mxu0 %v709
    %v768 = vpop.f32.mrf.mxu0
    %v769 = vadd.f32 0.0, %v768
    %v770 = vpop.f32.mrf.mxu0
    %771 = vdwg.mxu0
    %v772 = vadd.f32 %v677, %v769
    %s773 = scalar_lea.vmem [#allocation7], 384
    %v774 = vld [vmem:[%s773] sm:$0xf]
    %v775 = vld [vmem:[%s773 + $0x4] sm:$0xf]
    %v776 = vld [vmem:[%s773 + $0x8] sm:$0xf]
    %v777 = vld [vmem:[%s773 + $0xc] sm:$0xf]
    %v778 = vld [vmem:[%s773 + $0x10] sm:$0xf]
    %v779 = vld [vmem:[%s773 + $0x14] sm:$0xf]
    %v780 = vld [vmem:[%s773 + $0x18] sm:$0xf]
    %v781 = vld [vmem:[%s773 + $0x1c] sm:$0xf]
    %v782 = vld [vmem:[%s773 + $0x20] sm:$0xf]
    %v783 = vld [vmem:[%s773 + $0x24] sm:$0xf]
    %v784 = vld [vmem:[%s773 + $0x28] sm:$0xf]
    %v785 = vld [vmem:[%s773 + $0x2c] sm:$0xf]
    %v786 = vld [vmem:[%s773 + $0x30] sm:$0xf]
    %v787 = vld [vmem:[%s773 + $0x34] sm:$0xf]
    %v788 = vld [vmem:[%s773 + $0x38] sm:$0xf]
    %v789 = vld [vmem:[%s773 + $0x3c] sm:$0xf]
    %v790 = vrot.slane %v224, 6
    %v791 = vrot.slane %v225, 5
    %v792 = vsel %vm233, %v791, %v790
    %v793 = vrot.slane %v226, 4
    %v794 = vsel %vm236, %v793, %v792
    %v795 = vrot.slane %v227, 3
    %v796 = vsel %vm239, %v795, %v794
    %v797 = vrot.slane %v228, 2
    %v798 = vsel %vm242, %v797, %v796
    %v799 = vrot.slane %v229, 1
    %v800 = vsel %vm245, %v799, %v798
    %v801 = vsel %vm248, %v230, %v800
    %v802 = vrot.slane %v231, 7
    %v803 = vsel %vm251, %v802, %v801
    %v804 = vpack.c.b16 %v803, %v803
    %v822 = vunpack.c.l.b16 %v774
    %v823 = vunpack.c.l.b16 %v775
    %v824 = vunpack.c.l.b16 %v776
    %v825 = vunpack.c.l.b16 %v777
    %v826 = vunpack.c.l.b16 %v778
    %v827 = vunpack.c.l.b16 %v779
    %v828 = vunpack.c.l.b16 %v780
    %v829 = vunpack.c.l.b16 %v781
    %v830 = vunpack.c.l.b16 %v782
    %v831 = vunpack.c.l.b16 %v783
    %v832 = vunpack.c.l.b16 %v784
    %v833 = vunpack.c.l.b16 %v785
    %v834 = vunpack.c.l.b16 %v786
    %v835 = vunpack.c.l.b16 %v787
    %v836 = vunpack.c.l.b16 %v788
    %v837 = vunpack.c.l.b16 %v789
    %v838 = vpack.c.b16 %v823, %v822
    %v839 = vpack.c.b16 %v825, %v824
    %v840 = vpack.c.b16 %v827, %v826
    %v841 = vpack.c.b16 %v829, %v828
    %v842 = vpack.c.b16 %v831, %v830
    %v843 = vpack.c.b16 %v833, %v832
    %v844 = vpack.c.b16 %v835, %v834
    %v845 = vpack.c.b16 %v837, %v836
    %854 = vmatpush.bf16.msra.mxu0 %v845
    %855 = vmatpush.bf16.msra.mxu0 %v844
    %856 = vmatpush.bf16.msra.mxu0 %v843
    %857 = vmatpush.bf16.msra.mxu0 %v842
    %858 = vmatpush.bf16.msra.mxu0 %v841
    %859 = vmatpush.bf16.msra.mxu0 %v840
    %860 = vmatpush.bf16.msra.mxu0 %v839
    %861 = vmatpush.bf16.msra.mxu0 %v838
    %862 = vmatmul.bf16.gmra.mxu0 %v804
    %v863 = vpop.f32.mrf.mxu0
    %v864 = vadd.f32 0.0, %v863
    %v865 = vpop.f32.mrf.mxu0
    %866 = vdwg.mxu0
    %v867 = vadd.f32 %v772, %v864
    %s868 = scalar_lea.vmem [#allocation7], 448
    %v869 = vld [vmem:[%s868] sm:$0xf]
    %v870 = vld [vmem:[%s868 + $0x4] sm:$0xf]
    %v871 = vld [vmem:[%s868 + $0x8] sm:$0xf]
    %v872 = vld [vmem:[%s868 + $0xc] sm:$0xf]
    %v873 = vld [vmem:[%s868 + $0x10] sm:$0xf]
    %v874 = vld [vmem:[%s868 + $0x14] sm:$0xf]
    %v875 = vld [vmem:[%s868 + $0x18] sm:$0xf]
    %v876 = vld [vmem:[%s868 + $0x1c] sm:$0xf]
    %v877 = vld [vmem:[%s868 + $0x20] sm:$0xf]
    %v878 = vld [vmem:[%s868 + $0x24] sm:$0xf]
    %v879 = vld [vmem:[%s868 + $0x28] sm:$0xf]
    %v880 = vld [vmem:[%s868 + $0x2c] sm:$0xf]
    %v881 = vld [vmem:[%s868 + $0x30] sm:$0xf]
    %v882 = vld [vmem:[%s868 + $0x34] sm:$0xf]
    %v883 = vld [vmem:[%s868 + $0x38] sm:$0xf]
    %v884 = vld [vmem:[%s868 + $0x3c] sm:$0xf]
    %v885 = vrot.slane %v224, 7
    %v886 = vrot.slane %v225, 6
    %v887 = vsel %vm233, %v886, %v885
    %v888 = vrot.slane %v226, 5
    %v889 = vsel %vm236, %v888, %v887
    %v890 = vrot.slane %v227, 4
    %v891 = vsel %vm239, %v890, %v889
    %v892 = vrot.slane %v228, 3
    %v893 = vsel %vm242, %v892, %v891
    %v894 = vrot.slane %v229, 2
    %v895 = vsel %vm245, %v894, %v893
    %v896 = vrot.slane %v230, 1
    %v897 = vsel %vm248, %v896, %v895
    %v898 = vsel %vm251, %v231, %v897
    %v899 = vpack.c.b16 %v898, %v898
    %v917 = vunpack.c.l.b16 %v869
    %v918 = vunpack.c.l.b16 %v870
    %v919 = vunpack.c.l.b16 %v871
    %v920 = vunpack.c.l.b16 %v872
    %v921 = vunpack.c.l.b16 %v873
    %v922 = vunpack.c.l.b16 %v874
    %v923 = vunpack.c.l.b16 %v875
    %v924 = vunpack.c.l.b16 %v876
    %v925 = vunpack.c.l.b16 %v877
    %v926 = vunpack.c.l.b16 %v878
    %v927 = vunpack.c.l.b16 %v879
    %v928 = vunpack.c.l.b16 %v880
    %v929 = vunpack.c.l.b16 %v881
    %v930 = vunpack.c.l.b16 %v882
    %v931 = vunpack.c.l.b16 %v883
    %v932 = vunpack.c.l.b16 %v884
    %v933 = vpack.c.b16 %v918, %v917
    %v934 = vpack.c.b16 %v920, %v919
    %v935 = vpack.c.b16 %v922, %v921
    %v936 = vpack.c.b16 %v924, %v923
    %v937 = vpack.c.b16 %v926, %v925
    %v938 = vpack.c.b16 %v928, %v927
    %v939 = vpack.c.b16 %v930, %v929
    %v940 = vpack.c.b16 %v932, %v931
    %949 = vmatpush.bf16.msra.mxu0 %v940
    %950 = vmatpush.bf16.msra.mxu0 %v939
    %951 = vmatpush.bf16.msra.mxu0 %v938
    %952 = vmatpush.bf16.msra.mxu0 %v937
    %953 = vmatpush.bf16.msra.mxu0 %v936
    %954 = vmatpush.bf16.msra.mxu0 %v935
    %955 = vmatpush.bf16.msra.mxu0 %v934
    %956 = vmatpush.bf16.msra.mxu0 %v933
    %957 = vmatmul.bf16.gmra.mxu0 %v899
    %v958 = vpop.f32.mrf.mxu0
    %v959 = vadd.f32 0.0, %v958
    %v960 = vpop.f32.mrf.mxu0
    %961 = vdwg.mxu0
    %v962 = vadd.f32 %v867, %v959
    %v963 = vld [vmem:[%s4] sm:$0x1]
    %v965 = vperm.slane %v963, 0
    %v967 = vadd.f32 %v962, %v965
    %968 = vst [vmem:[#allocation8] sm:$0xff] %v967
    // Predicated region
    $region34: #{tpu_custom_call.1} parent=1 // pred_check
      _
    $region35: #{tpu_custom_call.1} parent=1 // pred_check_branch
      %970 = sbr.rel (0) target = $region37
    $region36: #{tpu_custom_call.1} parent=1 // pred_region
      %972 = vsyncadd [#allocation4], 0
      %s974 = sshll.u32 [#allocation8], 4
      %s975 = int_to_ptr.vmem [resolvable:$true] %s974
      %s976 = sshll.u32 %s5, 4
      %s977 = int_to_ptr.hbm [resolvable:$true] %s976
      %979 = dma.vmem_to_hbm [thread:$0]  %s975, 128, %s977, [#allocation4]
    $region37: #{tpu_custom_call.1} parent=1 // pred_fallthru
      _
    // Predicated region
    $region38: #{tpu_custom_call.1} parent=1 // pred_check
      _
    $region39: #{tpu_custom_call.1} parent=1 // pred_check_branch
      %981 = sbr.rel (0) target = $region41
    $region40: #{tpu_custom_call.1} parent=1 // pred_region
      %983 = dma.done [#allocation4], 128
    $region41: #{tpu_custom_call.1} parent=1 // pred_fallthru
      _
    %984 = vsyncpa [#allocation3], 1
    %985 = vsyncpa [#allocation6], 1
    %986 = vsyncpa [#allocation4], 1

</llo_original>
